<compile_context>
chip_gen: v7x
topology: tpu7x:2x2x1
jax: 0.10.0
libtpu: 0.0.40
codegen_flags: <defaults>
</compile_context>

<pallas_src>
import jax
import jax.numpy as jnp
from jax import lax
from jax.experimental import pallas as pl
from jax.experimental.pallas import tpu as pltpu

KSIZE = 5
PAD = 2        # 'same' padding for kernel_size=5, stride=1
LANE = 128


def _round_up(x, m):
  return (x + m - 1) // m * m


def _pick_batch_tile(batch):
  """Largest divisor of `batch` <= 8 that still leaves >= 2 grid steps."""
  best = 1
  for cand in range(1, min(batch, 8) + 1):
    if batch % cand == 0 and (batch == 1 or batch // cand >= 2):
      best = cand
  return best


def _make_fused_kernel(n_layers, seq_len, seg_len):
  """seq_len = L (valid lanes per segment), seg_len = padded segment width."""

  def kernel(*refs):
    x_ref = refs[0]
    o_ref = refs[-1]
    wb_refs = refs[1:-1]                          # (w, b) pairs, flattened

    width = x_ref.shape[-1]                       # bt * seg_len lanes
    col = lax.broadcasted_iota(jnp.int32, (1, width), 1)
    valid = (col % seg_len) < seq_len             # per-segment valid lanes

    def conv_relu(h, w_ref, b_ref):
      # h: (Cin, width); lanes >= seq_len inside each segment are zero, so a
      # lane shift by +-PAD only pulls in zeros (left edge / segment boundary)
      # or writes into lanes that are masked right after the layer.
      taps = []
      for k in range(KSIZE):
        shift = PAD - k                           # tap k reads h[:, i + k - PAD]
        taps.append(h if shift == 0 else jnp.roll(h, shift, axis=1))
      stack = jnp.concatenate(taps, axis=0)       # (KSIZE * Cin, width)
      acc = jnp.dot(w_ref[...], stack, preferred_element_type=jnp.float32)
      acc = jnp.maximum(acc + b_ref[...], 0.0)    # bias + ReLU
      # Re-establish the zero tail so the next layer's 'same' padding is exact.
      return jnp.where(valid, acc, 0.0)

    h = jnp.where(valid, x_ref[...].astype(jnp.float32), 0.0)
    for li in range(n_layers):
      h = conv_relu(h, wb_refs[2 * li], wb_refs[2 * li + 1])
    o_ref[...] = h.astype(o_ref.dtype)

  return kernel


@jax.jit
def simple_conv_forward(x_ncl, params):
  """Forward pass matching SimpleConv.forward.

  x_ncl: (B, in_channels, L)  -- Conv1d NCL layout.
  params: list of (weight (Cout, Cin, K), bias (Cout,)) per layer.
  returns: (B, out_channels, L)
  """
  batch, c_in, seq_len = x_ncl.shape
  n_layers = len(params)
  c_out = params[-1][0].shape[0]

  seg_len = _round_up(seq_len + PAD, LANE)        # >= L + PAD, lane-aligned
  bt = _pick_batch_tile(batch)
  width = bt * seg_len

  # (B, Cin, L) -> (Cin, B * seg_len), zero tail in every batch segment.
  x = jnp.pad(x_ncl.astype(jnp.float32),
              ((0, 0), (0, 0), (0, seg_len - seq_len)))
  x = jnp.transpose(x, (1, 0, 2)).reshape(c_in, batch * seg_len)

  # Weights flattened to (Cout, K*Cin) with tap-major column blocks
  # (W_flat[o, k*Cin + c] == W[o, c, k]); biases as (Cout, 1) lane-broadcast.
  in_specs = [pl.BlockSpec((c_in, width), lambda i: (0, i))]
  operands = [x]
  for w, b in params:
    co, ci, k = w.shape
    w_flat = jnp.transpose(w, (0, 2, 1)).reshape(co, k * ci).astype(jnp.float32)
    b_col = b.reshape(co, 1).astype(jnp.float32)
    in_specs.append(pl.BlockSpec(w_flat.shape, lambda i: (0, 0)))
    in_specs.append(pl.BlockSpec(b_col.shape, lambda i: (0, 0)))
    operands.extend((w_flat, b_col))

  out = pl.pallas_call(
      _make_fused_kernel(n_layers, seq_len, seg_len),
      out_shape=jax.ShapeDtypeStruct((c_out, batch * seg_len), jnp.float32),
      grid_spec=pltpu.PrefetchScalarGridSpec(
          num_scalar_prefetch=0,
          grid=(batch // bt,),
          in_specs=in_specs,
          out_specs=pl.BlockSpec((c_out, width), lambda i: (0, i)),
      ),
      compiler_params=pltpu.CompilerParams(
          dimension_semantics=("parallel",),
      ),
  )(*operands)

  # (Cout, B*seg_len) -> (B, Cout, L)
  out = out.reshape(c_out, batch, seg_len).transpose(1, 0, 2)[:, :, :seq_len]
  return out


def init_simple_conv_params(key, in_channels=8, out_channels=8):
  """Deterministic synthetic stand-in for init_sequential_weights."""
  channels = [in_channels, 16, 32, 16, out_channels]
  params = []
  for i in range(4):
    cin, cout = channels[i], channels[i + 1]
    key, wk, bk = jax.random.split(key, 3)
    std = 1.0 / jnp.sqrt(jnp.float32(cin * KSIZE))
    # PyTorch Conv1d weight layout: (Cout, Cin, K).
    w = jax.random.normal(wk, (cout, cin, KSIZE), dtype=jnp.float32) * std
    b = jax.random.normal(bk, (cout,), dtype=jnp.float32) * 0.1
    params.append((w, b))
  return params


def _reference_forward(x_ncl, params):
  """Pure-JAX reference using lax.conv_general_dilated (NCL layout)."""
  h = x_ncl
  for w, b in params:                    # w: (Cout, Cin, K) == OIH
    h = lax.conv_general_dilated(
        h, w,
        window_strides=(1,),
        padding=((PAD, PAD),),
        dimension_numbers=("NCH", "OIH", "NCH"),
        precision=lax.Precision.HIGHEST,
    )
    h = jnp.maximum(h + b[None, :, None], 0.0)
  return h


if __name__ == "__main__":
  key = jax.random.PRNGKey(0)
  key, xk = jax.random.split(key)

  B, C_IN, C_OUT, L = 2, 8, 8, 16
  x = jax.random.normal(xk, (B, C_IN, L), dtype=jnp.float32)
  params = init_simple_conv_params(key, in_channels=C_IN, out_channels=C_OUT)

  out = simple_conv_forward(x, params)
  out = jax.block_until_ready(out)

  ref = _reference_forward(x, params)
  assert out.shape == (B, C_OUT, L), out.shape
  assert jnp.allclose(out, ref, atol=1e-3, rtol=1e-3), (
      float(jnp.max(jnp.abs(out - ref)))
  )

  print("KERNEL_OK")
</pallas_src>

<mosaic_0001>
module attributes {stable_mosaic.version = 11 : i64} {
  func.func @kernel(%arg0: i32, %arg1: memref<8x128xf32, #tpu.memory_space<vmem>>, %arg2: memref<16x40xf32, #tpu.memory_space<vmem>>, %arg3: memref<16x1xf32, #tpu.memory_space<vmem>>, %arg4: memref<32x80xf32, #tpu.memory_space<vmem>>, %arg5: memref<32x1xf32, #tpu.memory_space<vmem>>, %arg6: memref<16x160xf32, #tpu.memory_space<vmem>>, %arg7: memref<16x1xf32, #tpu.memory_space<vmem>>, %arg8: memref<8x80xf32, #tpu.memory_space<vmem>>, %arg9: memref<8x1xf32, #tpu.memory_space<vmem>>, %arg10: memref<8x128xf32, #tpu.memory_space<vmem>>) attributes {dimension_semantics = [#tpu.dimension_semantics<parallel>], iteration_bounds = array<i64: 2>, scalar_prefetch = 0 : i64, scratch_operands = 0 : i64, tpu.core_type = #tpu.core_type<tc>, window_params = [{transform_indices = @transform_0, window_bounds = array<i64: 8, 128>}, {pipeline_mode = #tpu.pipeline_mode<synchronous>, transform_indices = @transform_1, window_bounds = array<i64: 16, 40>}, {pipeline_mode = #tpu.pipeline_mode<synchronous>, transform_indices = @transform_2, window_bounds = array<i64: 16, 1>}, {pipeline_mode = #tpu.pipeline_mode<synchronous>, transform_indices = @transform_3, window_bounds = array<i64: 32, 80>}, {pipeline_mode = #tpu.pipeline_mode<synchronous>, transform_indices = @transform_4, window_bounds = array<i64: 32, 1>}, {pipeline_mode = #tpu.pipeline_mode<synchronous>, transform_indices = @transform_5, window_bounds = array<i64: 16, 160>}, {pipeline_mode = #tpu.pipeline_mode<synchronous>, transform_indices = @transform_6, window_bounds = array<i64: 16, 1>}, {pipeline_mode = #tpu.pipeline_mode<synchronous>, transform_indices = @transform_7, window_bounds = array<i64: 8, 80>}, {pipeline_mode = #tpu.pipeline_mode<synchronous>, transform_indices = @transform_8, window_bounds = array<i64: 8, 1>}, {transform_indices = @transform_9, window_bounds = array<i64: 8, 128>}]} {
    %0 = tpu.iota {dimensions = array<i32: 1>} : vector<1x128xi32>
    %c128_i32 = arith.constant 128 : i32
    %c0_i32 = arith.constant 0 : i32
    %1 = arith.cmpi eq, %c128_i32, %c0_i32 : i32
    %c1_i32 = arith.constant 1 : i32
    %2 = arith.select %1, %c1_i32, %c128_i32 : i32
    %3 = vector.broadcast %2 : i32 to vector<1x128xi32>
    %4 = arith.remsi %0, %3 : vector<1x128xi32>
    %c0_i32_0 = arith.constant 0 : i32
    %5 = vector.broadcast %c0_i32_0 : i32 to vector<1x128xi32>
    %6 = arith.cmpi ne, %4, %5 : vector<1x128xi32>
    %c0_i32_1 = arith.constant 0 : i32
    %7 = vector.broadcast %c0_i32_1 : i32 to vector<1x128xi32>
    %8 = arith.cmpi slt, %4, %7 : vector<1x128xi32>
    %c0_i32_2 = arith.constant 0 : i32
    %9 = arith.cmpi slt, %2, %c0_i32_2 : i32
    %10 = vector.broadcast %9 : i1 to vector<1x128xi1>
    %11 = vector.broadcast %10 : vector<1x128xi1> to vector<1x128xi1>
    %12 = arith.xori %8, %11 : vector<1x128xi1>
    %13 = arith.andi %12, %6 : vector<1x128xi1>
    %14 = vector.broadcast %2 : i32 to vector<1x128xi32>
    %15 = arith.addi %4, %14 : vector<1x128xi32>
    %16 = arith.select %13, %15, %4 : vector<1x128xi1>, vector<1x128xi32>
    %c16_i32 = arith.constant 16 : i32
    %17 = vector.broadcast %c16_i32 : i32 to vector<1x128xi32>
    %18 = arith.cmpi slt, %16, %17 : vector<1x128xi32>
    %c0 = arith.constant 0 : index
    %c0_3 = arith.constant 0 : index
    %19 = vector.load %arg1[%c0, %c0_3] : memref<8x128xf32, #tpu.memory_space<vmem>>, vector<8x128xf32>
    %cst = arith.constant 0.000000e+00 : f32
    %20 = vector.shape_cast %18 : vector<1x128xi1> to vector<1x128xi1>
    %21 = vector.broadcast %20 : vector<1x128xi1> to vector<8x128xi1>
    %22 = vector.broadcast %cst : f32 to vector<8x128xf32>
    %23 = arith.select %21, %19, %22 : vector<8x128xi1>, vector<8x128xf32>
    %24 = vector.extract_strided_slice %23 {offsets = [0, 126], sizes = [8, 2], strides = [1, 1]} : vector<8x128xf32> to vector<8x2xf32>
    %25 = vector.extract_strided_slice %23 {offsets = [0, 0], sizes = [8, 126], strides = [1, 1]} : vector<8x128xf32> to vector<8x126xf32>
    %26 = tpu.concatenate %24, %25 in 1 : vector<8x2xf32>, vector<8x126xf32> -> vector<8x128xf32>
    %27 = vector.extract_strided_slice %23 {offsets = [0, 127], sizes = [8, 1], strides = [1, 1]} : vector<8x128xf32> to vector<8x1xf32>
    %28 = vector.extract_strided_slice %23 {offsets = [0, 0], sizes = [8, 127], strides = [1, 1]} : vector<8x128xf32> to vector<8x127xf32>
    %29 = tpu.concatenate %27, %28 in 1 : vector<8x1xf32>, vector<8x127xf32> -> vector<8x128xf32>
    %30 = vector.extract_strided_slice %23 {offsets = [0, 1], sizes = [8, 127], strides = [1, 1]} : vector<8x128xf32> to vector<8x127xf32>
    %31 = vector.extract_strided_slice %23 {offsets = [0, 0], sizes = [8, 1], strides = [1, 1]} : vector<8x128xf32> to vector<8x1xf32>
    %32 = tpu.concatenate %30, %31 in 1 : vector<8x127xf32>, vector<8x1xf32> -> vector<8x128xf32>
    %33 = vector.extract_strided_slice %23 {offsets = [0, 2], sizes = [8, 126], strides = [1, 1]} : vector<8x128xf32> to vector<8x126xf32>
    %34 = vector.extract_strided_slice %23 {offsets = [0, 0], sizes = [8, 2], strides = [1, 1]} : vector<8x128xf32> to vector<8x2xf32>
    %35 = tpu.concatenate %33, %34 in 1 : vector<8x126xf32>, vector<8x2xf32> -> vector<8x128xf32>
    %36 = tpu.concatenate %26, %29, %23, %32, %35 in 0 : vector<8x128xf32>, vector<8x128xf32>, vector<8x128xf32>, vector<8x128xf32>, vector<8x128xf32> -> vector<40x128xf32>
    %c0_4 = arith.constant 0 : index
    %c0_5 = arith.constant 0 : index
    %37 = vector.load %arg2[%c0_4, %c0_5] : memref<16x40xf32, #tpu.memory_space<vmem>>, vector<16x40xf32>
    %cst_6 = arith.constant dense<0.000000e+00> : vector<16x128xf32>
    %38 = tpu.matmul %37, %36, %cst_6 {dimension_numbers = #tpu.dot_dimension_numbers<[1], [0], [0], [1], [0, 0, 1, 1], [], []>} : vector<16x40xf32>, vector<40x128xf32>, vector<16x128xf32> -> vector<16x128xf32>
    %c0_7 = arith.constant 0 : index
    %c0_8 = arith.constant 0 : index
    %39 = vector.load %arg3[%c0_7, %c0_8] : memref<16x1xf32, #tpu.memory_space<vmem>>, vector<16x1xf32>
    %40 = vector.broadcast %39 : vector<16x1xf32> to vector<16x128xf32>
    %41 = arith.addf %38, %40 : vector<16x128xf32>
    %cst_9 = arith.constant 0.000000e+00 : f32
    %42 = vector.broadcast %cst_9 : f32 to vector<16x128xf32>
    %43 = arith.maximumf %41, %42 : vector<16x128xf32>
    %cst_10 = arith.constant 0.000000e+00 : f32
    %44 = vector.shape_cast %18 : vector<1x128xi1> to vector<1x128xi1>
    %45 = vector.broadcast %44 : vector<1x128xi1> to vector<16x128xi1>
    %46 = vector.broadcast %cst_10 : f32 to vector<16x128xf32>
    %47 = arith.select %45, %43, %46 : vector<16x128xi1>, vector<16x128xf32>
    %48 = vector.extract_strided_slice %47 {offsets = [0, 126], sizes = [16, 2], strides = [1, 1]} : vector<16x128xf32> to vector<16x2xf32>
    %49 = vector.extract_strided_slice %47 {offsets = [0, 0], sizes = [16, 126], strides = [1, 1]} : vector<16x128xf32> to vector<16x126xf32>
    %50 = tpu.concatenate %48, %49 in 1 : vector<16x2xf32>, vector<16x126xf32> -> vector<16x128xf32>
    %51 = vector.extract_strided_slice %47 {offsets = [0, 127], sizes = [16, 1], strides = [1, 1]} : vector<16x128xf32> to vector<16x1xf32>
    %52 = vector.extract_strided_slice %47 {offsets = [0, 0], sizes = [16, 127], strides = [1, 1]} : vector<16x128xf32> to vector<16x127xf32>
    %53 = tpu.concatenate %51, %52 in 1 : vector<16x1xf32>, vector<16x127xf32> -> vector<16x128xf32>
    %54 = vector.extract_strided_slice %47 {offsets = [0, 1], sizes = [16, 127], strides = [1, 1]} : vector<16x128xf32> to vector<16x127xf32>
    %55 = vector.extract_strided_slice %47 {offsets = [0, 0], sizes = [16, 1], strides = [1, 1]} : vector<16x128xf32> to vector<16x1xf32>
    %56 = tpu.concatenate %54, %55 in 1 : vector<16x127xf32>, vector<16x1xf32> -> vector<16x128xf32>
    %57 = vector.extract_strided_slice %47 {offsets = [0, 2], sizes = [16, 126], strides = [1, 1]} : vector<16x128xf32> to vector<16x126xf32>
    %58 = vector.extract_strided_slice %47 {offsets = [0, 0], sizes = [16, 2], strides = [1, 1]} : vector<16x128xf32> to vector<16x2xf32>
    %59 = tpu.concatenate %57, %58 in 1 : vector<16x126xf32>, vector<16x2xf32> -> vector<16x128xf32>
    %60 = tpu.concatenate %50, %53, %47, %56, %59 in 0 : vector<16x128xf32>, vector<16x128xf32>, vector<16x128xf32>, vector<16x128xf32>, vector<16x128xf32> -> vector<80x128xf32>
    %c0_11 = arith.constant 0 : index
    %c0_12 = arith.constant 0 : index
    %61 = vector.load %arg4[%c0_11, %c0_12] : memref<32x80xf32, #tpu.memory_space<vmem>>, vector<32x80xf32>
    %cst_13 = arith.constant dense<0.000000e+00> : vector<32x128xf32>
    %62 = tpu.matmul %61, %60, %cst_13 {dimension_numbers = #tpu.dot_dimension_numbers<[1], [0], [0], [1], [0, 0, 1, 1], [], []>} : vector<32x80xf32>, vector<80x128xf32>, vector<32x128xf32> -> vector<32x128xf32>
    %c0_14 = arith.constant 0 : index
    %c0_15 = arith.constant 0 : index
    %63 = vector.load %arg5[%c0_14, %c0_15] : memref<32x1xf32, #tpu.memory_space<vmem>>, vector<32x1xf32>
    %64 = vector.broadcast %63 : vector<32x1xf32> to vector<32x128xf32>
    %65 = arith.addf %62, %64 : vector<32x128xf32>
    %cst_16 = arith.constant 0.000000e+00 : f32
    %66 = vector.broadcast %cst_16 : f32 to vector<32x128xf32>
    %67 = arith.maximumf %65, %66 : vector<32x128xf32>
    %cst_17 = arith.constant 0.000000e+00 : f32
    %68 = vector.shape_cast %18 : vector<1x128xi1> to vector<1x128xi1>
    %69 = vector.broadcast %68 : vector<1x128xi1> to vector<32x128xi1>
    %70 = vector.broadcast %cst_17 : f32 to vector<32x128xf32>
    %71 = arith.select %69, %67, %70 : vector<32x128xi1>, vector<32x128xf32>
    %72 = vector.extract_strided_slice %71 {offsets = [0, 126], sizes = [32, 2], strides = [1, 1]} : vector<32x128xf32> to vector<32x2xf32>
    %73 = vector.extract_strided_slice %71 {offsets = [0, 0], sizes = [32, 126], strides = [1, 1]} : vector<32x128xf32> to vector<32x126xf32>
    %74 = tpu.concatenate %72, %73 in 1 : vector<32x2xf32>, vector<32x126xf32> -> vector<32x128xf32>
    %75 = vector.extract_strided_slice %71 {offsets = [0, 127], sizes = [32, 1], strides = [1, 1]} : vector<32x128xf32> to vector<32x1xf32>
    %76 = vector.extract_strided_slice %71 {offsets = [0, 0], sizes = [32, 127], strides = [1, 1]} : vector<32x128xf32> to vector<32x127xf32>
    %77 = tpu.concatenate %75, %76 in 1 : vector<32x1xf32>, vector<32x127xf32> -> vector<32x128xf32>
    %78 = vector.extract_strided_slice %71 {offsets = [0, 1], sizes = [32, 127], strides = [1, 1]} : vector<32x128xf32> to vector<32x127xf32>
    %79 = vector.extract_strided_slice %71 {offsets = [0, 0], sizes = [32, 1], strides = [1, 1]} : vector<32x128xf32> to vector<32x1xf32>
    %80 = tpu.concatenate %78, %79 in 1 : vector<32x127xf32>, vector<32x1xf32> -> vector<32x128xf32>
    %81 = vector.extract_strided_slice %71 {offsets = [0, 2], sizes = [32, 126], strides = [1, 1]} : vector<32x128xf32> to vector<32x126xf32>
    %82 = vector.extract_strided_slice %71 {offsets = [0, 0], sizes = [32, 2], strides = [1, 1]} : vector<32x128xf32> to vector<32x2xf32>
    %83 = tpu.concatenate %81, %82 in 1 : vector<32x126xf32>, vector<32x2xf32> -> vector<32x128xf32>
    %84 = tpu.concatenate %74, %77, %71, %80, %83 in 0 : vector<32x128xf32>, vector<32x128xf32>, vector<32x128xf32>, vector<32x128xf32>, vector<32x128xf32> -> vector<160x128xf32>
    %c0_18 = arith.constant 0 : index
    %c0_19 = arith.constant 0 : index
    %85 = vector.load %arg6[%c0_18, %c0_19] : memref<16x160xf32, #tpu.memory_space<vmem>>, vector<16x160xf32>
    %cst_20 = arith.constant dense<0.000000e+00> : vector<16x128xf32>
    %86 = tpu.matmul %85, %84, %cst_20 {dimension_numbers = #tpu.dot_dimension_numbers<[1], [0], [0], [1], [0, 0, 1, 1], [], []>} : vector<16x160xf32>, vector<160x128xf32>, vector<16x128xf32> -> vector<16x128xf32>
    %c0_21 = arith.constant 0 : index
    %c0_22 = arith.constant 0 : index
    %87 = vector.load %arg7[%c0_21, %c0_22] : memref<16x1xf32, #tpu.memory_space<vmem>>, vector<16x1xf32>
    %88 = vector.broadcast %87 : vector<16x1xf32> to vector<16x128xf32>
    %89 = arith.addf %86, %88 : vector<16x128xf32>
    %cst_23 = arith.constant 0.000000e+00 : f32
    %90 = vector.broadcast %cst_23 : f32 to vector<16x128xf32>
    %91 = arith.maximumf %89, %90 : vector<16x128xf32>
    %cst_24 = arith.constant 0.000000e+00 : f32
    %92 = vector.shape_cast %18 : vector<1x128xi1> to vector<1x128xi1>
    %93 = vector.broadcast %92 : vector<1x128xi1> to vector<16x128xi1>
    %94 = vector.broadcast %cst_24 : f32 to vector<16x128xf32>
    %95 = arith.select %93, %91, %94 : vector<16x128xi1>, vector<16x128xf32>
    %96 = vector.extract_strided_slice %95 {offsets = [0, 126], sizes = [16, 2], strides = [1, 1]} : vector<16x128xf32> to vector<16x2xf32>
    %97 = vector.extract_strided_slice %95 {offsets = [0, 0], sizes = [16, 126], strides = [1, 1]} : vector<16x128xf32> to vector<16x126xf32>
    %98 = tpu.concatenate %96, %97 in 1 : vector<16x2xf32>, vector<16x126xf32> -> vector<16x128xf32>
    %99 = vector.extract_strided_slice %95 {offsets = [0, 127], sizes = [16, 1], strides = [1, 1]} : vector<16x128xf32> to vector<16x1xf32>
    %100 = vector.extract_strided_slice %95 {offsets = [0, 0], sizes = [16, 127], strides = [1, 1]} : vector<16x128xf32> to vector<16x127xf32>
    %101 = tpu.concatenate %99, %100 in 1 : vector<16x1xf32>, vector<16x127xf32> -> vector<16x128xf32>
    %102 = vector.extract_strided_slice %95 {offsets = [0, 1], sizes = [16, 127], strides = [1, 1]} : vector<16x128xf32> to vector<16x127xf32>
    %103 = vector.extract_strided_slice %95 {offsets = [0, 0], sizes = [16, 1], strides = [1, 1]} : vector<16x128xf32> to vector<16x1xf32>
    %104 = tpu.concatenate %102, %103 in 1 : vector<16x127xf32>, vector<16x1xf32> -> vector<16x128xf32>
    %105 = vector.extract_strided_slice %95 {offsets = [0, 2], sizes = [16, 126], strides = [1, 1]} : vector<16x128xf32> to vector<16x126xf32>
    %106 = vector.extract_strided_slice %95 {offsets = [0, 0], sizes = [16, 2], strides = [1, 1]} : vector<16x128xf32> to vector<16x2xf32>
    %107 = tpu.concatenate %105, %106 in 1 : vector<16x126xf32>, vector<16x2xf32> -> vector<16x128xf32>
    %108 = tpu.concatenate %98, %101, %95, %104, %107 in 0 : vector<16x128xf32>, vector<16x128xf32>, vector<16x128xf32>, vector<16x128xf32>, vector<16x128xf32> -> vector<80x128xf32>
    %c0_25 = arith.constant 0 : index
    %c0_26 = arith.constant 0 : index
    %109 = vector.load %arg8[%c0_25, %c0_26] : memref<8x80xf32, #tpu.memory_space<vmem>>, vector<8x80xf32>
    %cst_27 = arith.constant dense<0.000000e+00> : vector<8x128xf32>
    %110 = tpu.matmul %109, %108, %cst_27 {dimension_numbers = #tpu.dot_dimension_numbers<[1], [0], [0], [1], [0, 0, 1, 1], [], []>} : vector<8x80xf32>, vector<80x128xf32>, vector<8x128xf32> -> vector<8x128xf32>
    %c0_28 = arith.constant 0 : index
    %c0_29 = arith.constant 0 : index
    %111 = vector.load %arg9[%c0_28, %c0_29] : memref<8x1xf32, #tpu.memory_space<vmem>>, vector<8x1xf32>
    %112 = vector.broadcast %111 : vector<8x1xf32> to vector<8x128xf32>
    %113 = arith.addf %110, %112 : vector<8x128xf32>
    %cst_30 = arith.constant 0.000000e+00 : f32
    %114 = vector.broadcast %cst_30 : f32 to vector<8x128xf32>
    %115 = arith.maximumf %113, %114 : vector<8x128xf32>
    %cst_31 = arith.constant 0.000000e+00 : f32
    %116 = vector.shape_cast %18 : vector<1x128xi1> to vector<1x128xi1>
    %117 = vector.broadcast %116 : vector<1x128xi1> to vector<8x128xi1>
    %118 = vector.broadcast %cst_31 : f32 to vector<8x128xf32>
    %119 = arith.select %117, %115, %118 : vector<8x128xi1>, vector<8x128xf32>
    %c0_32 = arith.constant 0 : index
    %c0_33 = arith.constant 0 : index
    %120 = vector.load %arg10[%c0_32, %c0_33] : memref<8x128xf32, #tpu.memory_space<vmem>>, vector<8x128xf32>
    tpu.vector_store %arg10[%c0_32, %c0_33], %119 {strides = array<i32>} : memref<8x128xf32, #tpu.memory_space<vmem>>, vector<8x128xf32>,
    return
  }
  func.func @transform_0(%arg0: i32) -> (i32, i32) {
    %c0_i32 = arith.constant 0 : i32
    %c0_i32_0 = arith.constant 0 : i32
    return %c0_i32, %arg0 : i32, i32
  }
  func.func @transform_1(%arg0: i32) -> (i32, i32) {
    %c0_i32 = arith.constant 0 : i32
    %c0_i32_0 = arith.constant 0 : i32
    %c0_i32_1 = arith.constant 0 : i32
    return %c0_i32, %c0_i32_0 : i32, i32
  }
  func.func @transform_2(%arg0: i32) -> (i32, i32) {
    %c0_i32 = arith.constant 0 : i32
    %c0_i32_0 = arith.constant 0 : i32
    %c0_i32_1 = arith.constant 0 : i32
    return %c0_i32, %c0_i32_0 : i32, i32
  }
  func.func @transform_3(%arg0: i32) -> (i32, i32) {
    %c0_i32 = arith.constant 0 : i32
    %c0_i32_0 = arith.constant 0 : i32
    %c0_i32_1 = arith.constant 0 : i32
    return %c0_i32, %c0_i32_0 : i32, i32
  }
  func.func @transform_4(%arg0: i32) -> (i32, i32) {
    %c0_i32 = arith.constant 0 : i32
    %c0_i32_0 = arith.constant 0 : i32
    %c0_i32_1 = arith.constant 0 : i32
    return %c0_i32, %c0_i32_0 : i32, i32
  }
  func.func @transform_5(%arg0: i32) -> (i32, i32) {
    %c0_i32 = arith.constant 0 : i32
    %c0_i32_0 = arith.constant 0 : i32
    %c0_i32_1 = arith.constant 0 : i32
    return %c0_i32, %c0_i32_0 : i32, i32
  }
  func.func @transform_6(%arg0: i32) -> (i32, i32) {
    %c0_i32 = arith.constant 0 : i32
    %c0_i32_0 = arith.constant 0 : i32
    %c0_i32_1 = arith.constant 0 : i32
    return %c0_i32, %c0_i32_0 : i32, i32
  }
  func.func @transform_7(%arg0: i32) -> (i32, i32) {
    %c0_i32 = arith.constant 0 : i32
    %c0_i32_0 = arith.constant 0 : i32
    %c0_i32_1 = arith.constant 0 : i32
    return %c0_i32, %c0_i32_0 : i32, i32
  }
  func.func @transform_8(%arg0: i32) -> (i32, i32) {
    %c0_i32 = arith.constant 0 : i32
    %c0_i32_0 = arith.constant 0 : i32
    %c0_i32_1 = arith.constant 0 : i32
    return %c0_i32, %c0_i32_0 : i32, i32
  }
  func.func @transform_9(%arg0: i32) -> (i32, i32) {
    %c0_i32 = arith.constant 0 : i32
    %c0_i32_0 = arith.constant 0 : i32
    return %c0_i32, %arg0 : i32, i32
  }
}

</mosaic_0001>

<llo_original>
// kernel: simple_conv_forward.1
$region0: #{simple_conv_forward.1}
  #allocation0 [shape = 'u32[]', space=smem, size = 0x4, offset = 0x4, fixed_abs, tag = 'smem constant byte address 0x4 - core index']
  #allocation1 [shape = 'u32[144,128]{1,0:T(1,128)}', space=vmem, size = 0x12000, scoped, tag = 'internal scratch']
  %s0 = inlined_call_operand.vmem [shape: f32[8,256], index: 0, kind: input, shape index: {}]
  %s1 = inlined_call_operand.vmem [shape: f32[16,40], index: 1, kind: input, shape index: {}]
  %s2 = inlined_call_operand.vmem [shape: f32[16,1], index: 2, kind: input, shape index: {}]
  %s3 = inlined_call_operand.vmem [shape: f32[32,80], index: 3, kind: input, shape index: {}]
  %s4 = inlined_call_operand.vmem [shape: f32[32,1], index: 4, kind: input, shape index: {}]
  %s5 = inlined_call_operand.vmem [shape: f32[16,160], index: 5, kind: input, shape index: {}]
  %s6 = inlined_call_operand.vmem [shape: f32[16,1], index: 6, kind: input, shape index: {}]
  %s7 = inlined_call_operand.vmem [shape: f32[8,80], index: 7, kind: input, shape index: {}]
  %s8 = inlined_call_operand.vmem [shape: f32[8,1], index: 8, kind: input, shape index: {}]
  %s9 = inlined_call_operand.hbm [shape: f32[8,256], index: 9, kind: output, shape index: {}]
  %s10 = sld [smem:[#allocation0]]
  $region69: #{simple_conv_forward.1} parent=0
    _
  %s12 = ssub.s32 1, %s10
  %s13 = scalar_select 0, %s12, %s10
  $region1: #{simple_conv_forward.1} parent=0
    #allocation2 [shape = 'u8[8192]{0}', space=vmem, size = 0x2000, scoped, tag = 'output window, operand 0']
    #allocation3 [shape = 's32[2]{0}', space=sflag, size = 0x8, scoped, tag = 'scoped memory for simple_conv_forward.1']
    %14 = vsyncpa [#allocation3], 0
    %s15 = scalar_lea.sflag [#allocation3], 1
    %16 = vsyncpa %s15, 0
    loop: start=0, step=1, limit=4
    $region2: #{simple_conv_forward.1} parent=1 // loop_pre_header
      _
    $region3: #{simple_conv_forward.1} parent=1 // loop_header
      %s18 = sphi 0, %s22
      %p19 = scmp.ge.s32.totalorder %s18, 4
      %s28 = sphi 0, %s30
      %s31 = sphi 0, %s28
      %s32 = sphi 0, %s31
      %s48 = sphi 0, %s32
      %s52 = sphi 0, %s52
      %s54 = sphi 0, %s52
      %s55 = sphi 0, %s54
      %s69 = sphi 0, %s55
      %s73 = sphi 0, %s73
      %s75 = sphi 0, %s73
      %s76 = sphi 0, %s75
      %s90 = sphi 0, %s76
      %s94 = sphi 0, %s94
      %s96 = sphi 0, %s94
      %s97 = sphi 0, %s96
      %s111 = sphi 0, %s97
      %s115 = sphi 0, %s115
      %s117 = sphi 0, %s115
      %s118 = sphi 0, %s117
      %s132 = sphi 0, %s118
      %s136 = sphi 0, %s136
      %s138 = sphi 0, %s136
      %s139 = sphi 0, %s138
      %s153 = sphi 0, %s139
      %s157 = sphi 0, %s157
      %s159 = sphi 0, %s157
      %s160 = sphi 0, %s159
      %s174 = sphi 0, %s160
      %s178 = sphi 0, %s178
      %s180 = sphi 0, %s178
      %s181 = sphi 0, %s180
      %s195 = sphi 0, %s181
      %s199 = sphi 0, %s199
      %s201 = sphi 0, %s199
      %s202 = sphi 0, %s201
      %s216 = sphi 0, %s202
      %s222 = sphi 0, %s224
      %s225 = sphi 0, %s222
      %s226 = sphi 0, %s225
      %s242 = sphi 0, %s226
    $region4: #{simple_conv_forward.1} parent=1 // loop_header_branch
      %21 = sbr.rel (%p19) target = $region8
    $region5: #{simple_conv_forward.1} parent=1 // loop_body
      %s23 = ssub.s32 %s18, 1
      %s24 = ssub.s32 %s18, 2
      %s25 = sadd.s32 %s18, 1
      %s26 = ssub.s32 %s18, %s25
      %p27 = scmp.eq.s32.totalorder %s26, 0
      %s29 = sadd.s32 %s28, 1
      %s30 = scalar_select %p27, %s28, %s29
      %p33 = pneg %p27
      %p34 = scmp.eq.s32.totalorder %s18, 1
      %p35 = por %p33, %p34
      %p36 = scmp.ne.s32.totalorder %s28, %s31
      %p37 = scmp.eq.s32.totalorder %s18, 0
      %p38 = por %p36, %p37
      %p39 = scmp.ne.s32.totalorder %s28, %s31
      %p40 = scmp.eq.s32.totalorder %s23, 1
      %p41 = por %p39, %p40
      %p42 = scmp.ne.s32.totalorder %s31, %s32
      %p43 = scmp.eq.s32.totalorder %s23, 0
      %p44 = por %p42, %p43
      %p45 = scmp.ne.s32.totalorder %s31, %s32
      %p46 = scmp.eq.s32.totalorder %s24, 1
      %p47 = por %p45, %p46
      %p49 = scmp.ne.s32.totalorder %s32, %s48
      %p50 = scmp.eq.s32.totalorder %s24, 0
      %p51 = por %p49, %p50
      %s53 = sadd.s32 %s52, 1
      %p56 = scmp.eq.s32.totalorder %s18, 1
      %p57 = scmp.ne.s32.totalorder %s52, %s54
      %p58 = scmp.eq.s32.totalorder %s18, 0
      %p59 = por %p57, %p58
      %p60 = scmp.ne.s32.totalorder %s52, %s54
      %p61 = scmp.eq.s32.totalorder %s23, 1
      %p62 = por %p60, %p61
      %p63 = scmp.ne.s32.totalorder %s54, %s55
      %p64 = scmp.eq.s32.totalorder %s23, 0
      %p65 = por %p63, %p64
      %p66 = scmp.ne.s32.totalorder %s54, %s55
      %p67 = scmp.eq.s32.totalorder %s24, 1
      %p68 = por %p66, %p67
      %p70 = scmp.ne.s32.totalorder %s55, %s69
      %p71 = scmp.eq.s32.totalorder %s24, 0
      %p72 = por %p70, %p71
      %s74 = sadd.s32 %s73, 1
      %p77 = scmp.eq.s32.totalorder %s18, 1
      %p78 = scmp.ne.s32.totalorder %s73, %s75
      %p79 = scmp.eq.s32.totalorder %s18, 0
      %p80 = por %p78, %p79
      %p81 = scmp.ne.s32.totalorder %s73, %s75
      %p82 = scmp.eq.s32.totalorder %s23, 1
      %p83 = por %p81, %p82
      %p84 = scmp.ne.s32.totalorder %s75, %s76
      %p85 = scmp.eq.s32.totalorder %s23, 0
      %p86 = por %p84, %p85
      %p87 = scmp.ne.s32.totalorder %s75, %s76
      %p88 = scmp.eq.s32.totalorder %s24, 1
      %p89 = por %p87, %p88
      %p91 = scmp.ne.s32.totalorder %s76, %s90
      %p92 = scmp.eq.s32.totalorder %s24, 0
      %p93 = por %p91, %p92
      %s95 = sadd.s32 %s94, 1
      %p98 = scmp.eq.s32.totalorder %s18, 1
      %p99 = scmp.ne.s32.totalorder %s94, %s96
      %p100 = scmp.eq.s32.totalorder %s18, 0
      %p101 = por %p99, %p100
      %p102 = scmp.ne.s32.totalorder %s94, %s96
      %p103 = scmp.eq.s32.totalorder %s23, 1
      %p104 = por %p102, %p103
      %p105 = scmp.ne.s32.totalorder %s96, %s97
      %p106 = scmp.eq.s32.totalorder %s23, 0
      %p107 = por %p105, %p106
      %p108 = scmp.ne.s32.totalorder %s96, %s97
      %p109 = scmp.eq.s32.totalorder %s24, 1
      %p110 = por %p108, %p109
      %p112 = scmp.ne.s32.totalorder %s97, %s111
      %p113 = scmp.eq.s32.totalorder %s24, 0
      %p114 = por %p112, %p113
      %s116 = sadd.s32 %s115, 1
      %p119 = scmp.eq.s32.totalorder %s18, 1
      %p120 = scmp.ne.s32.totalorder %s115, %s117
      %p121 = scmp.eq.s32.totalorder %s18, 0
      %p122 = por %p120, %p121
      %p123 = scmp.ne.s32.totalorder %s115, %s117
      %p124 = scmp.eq.s32.totalorder %s23, 1
      %p125 = por %p123, %p124
      %p126 = scmp.ne.s32.totalorder %s117, %s118
      %p127 = scmp.eq.s32.totalorder %s23, 0
      %p128 = por %p126, %p127
      %p129 = scmp.ne.s32.totalorder %s117, %s118
      %p130 = scmp.eq.s32.totalorder %s24, 1
      %p131 = por %p129, %p130
      %p133 = scmp.ne.s32.totalorder %s118, %s132
      %p134 = scmp.eq.s32.totalorder %s24, 0
      %p135 = por %p133, %p134
      %s137 = sadd.s32 %s136, 1
      %p140 = scmp.eq.s32.totalorder %s18, 1
      %p141 = scmp.ne.s32.totalorder %s136, %s138
      %p142 = scmp.eq.s32.totalorder %s18, 0
      %p143 = por %p141, %p142
      %p144 = scmp.ne.s32.totalorder %s136, %s138
      %p145 = scmp.eq.s32.totalorder %s23, 1
      %p146 = por %p144, %p145
      %p147 = scmp.ne.s32.totalorder %s138, %s139
      %p148 = scmp.eq.s32.totalorder %s23, 0
      %p149 = por %p147, %p148
      %p150 = scmp.ne.s32.totalorder %s138, %s139
      %p151 = scmp.eq.s32.totalorder %s24, 1
      %p152 = por %p150, %p151
      %p154 = scmp.ne.s32.totalorder %s139, %s153
      %p155 = scmp.eq.s32.totalorder %s24, 0
      %p156 = por %p154, %p155
      %s158 = sadd.s32 %s157, 1
      %p161 = scmp.eq.s32.totalorder %s18, 1
      %p162 = scmp.ne.s32.totalorder %s157, %s159
      %p163 = scmp.eq.s32.totalorder %s18, 0
      %p164 = por %p162, %p163
      %p165 = scmp.ne.s32.totalorder %s157, %s159
      %p166 = scmp.eq.s32.totalorder %s23, 1
      %p167 = por %p165, %p166
      %p168 = scmp.ne.s32.totalorder %s159, %s160
      %p169 = scmp.eq.s32.totalorder %s23, 0
      %p170 = por %p168, %p169
      %p171 = scmp.ne.s32.totalorder %s159, %s160
      %p172 = scmp.eq.s32.totalorder %s24, 1
      %p173 = por %p171, %p172
      %p175 = scmp.ne.s32.totalorder %s160, %s174
      %p176 = scmp.eq.s32.totalorder %s24, 0
      %p177 = por %p175, %p176
      %s179 = sadd.s32 %s178, 1
      %p182 = scmp.eq.s32.totalorder %s18, 1
      %p183 = scmp.ne.s32.totalorder %s178, %s180
      %p184 = scmp.eq.s32.totalorder %s18, 0
      %p185 = por %p183, %p184
      %p186 = scmp.ne.s32.totalorder %s178, %s180
      %p187 = scmp.eq.s32.totalorder %s23, 1
      %p188 = por %p186, %p187
      %p189 = scmp.ne.s32.totalorder %s180, %s181
      %p190 = scmp.eq.s32.totalorder %s23, 0
      %p191 = por %p189, %p190
      %p192 = scmp.ne.s32.totalorder %s180, %s181
      %p193 = scmp.eq.s32.totalorder %s24, 1
      %p194 = por %p192, %p193
      %p196 = scmp.ne.s32.totalorder %s181, %s195
      %p197 = scmp.eq.s32.totalorder %s24, 0
      %p198 = por %p196, %p197
      %s200 = sadd.s32 %s199, 1
      %p203 = scmp.eq.s32.totalorder %s18, 1
      %p204 = scmp.ne.s32.totalorder %s199, %s201
      %p205 = scmp.eq.s32.totalorder %s18, 0
      %p206 = por %p204, %p205
      %p207 = scmp.ne.s32.totalorder %s199, %s201
      %p208 = scmp.eq.s32.totalorder %s23, 1
      %p209 = por %p207, %p208
      %p210 = scmp.ne.s32.totalorder %s201, %s202
      %p211 = scmp.eq.s32.totalorder %s23, 0
      %p212 = por %p210, %p211
      %p213 = scmp.ne.s32.totalorder %s201, %s202
      %p214 = scmp.eq.s32.totalorder %s24, 1
      %p215 = por %p213, %p214
      %p217 = scmp.ne.s32.totalorder %s202, %s216
      %p218 = scmp.eq.s32.totalorder %s24, 0
      %p219 = por %p217, %p218
      %s220 = ssub.s32 %s18, %s25
      %p221 = scmp.eq.s32.totalorder %s220, 0
      %s223 = sadd.s32 %s222, 1
      %s224 = scalar_select %p221, %s222, %s223
      %p227 = pneg %p221
      %p228 = scmp.eq.s32.totalorder %s18, 1
      %p229 = por %p227, %p228
      %p230 = scmp.ne.s32.totalorder %s222, %s225
      %p231 = scmp.eq.s32.totalorder %s18, 0
      %p232 = por %p230, %p231
      %p233 = scmp.ne.s32.totalorder %s222, %s225
      %p234 = scmp.eq.s32.totalorder %s23, 1
      %p235 = por %p233, %p234
      %p236 = scmp.ne.s32.totalorder %s225, %s226
      %p237 = scmp.eq.s32.totalorder %s23, 0
      %p238 = por %p236, %p237
      %p239 = scmp.ne.s32.totalorder %s225, %s226
      %p240 = scmp.eq.s32.totalorder %s24, 1
      %p241 = por %p239, %p240
      %p243 = scmp.ne.s32.totalorder %s226, %s242
      %p244 = scmp.eq.s32.totalorder %s24, 0
      %p245 = por %p243, %p244
      %p246 = scmp.le.s32.totalorder 1, %s18
      %p247 = scmp.lt.s32.totalorder %s18, 3
      %p248 = pnand %p246, %p247
      %p249 = pneg %p248
      // Predicated region
      $region9: #{simple_conv_forward.1} parent=5 // pred_check
        _
      $region10: #{simple_conv_forward.1} parent=5 // pred_check_branch
        %251 = sbr.rel (%p248) target = $region12
      $region11: #{simple_conv_forward.1} parent=5 // pred_region
        %s252 = ssub.s32 %s18, 1
        // Predicated region
        $region13: #{simple_conv_forward.1} parent=11 // pred_check
          %p253 = pneg %p65
        $region14: #{simple_conv_forward.1} parent=11 // pred_check_branch
          %255 = sbr.rel (%p253) target = $region16
        $region15: #{simple_conv_forward.1} parent=11 // pred_region
          _
        $region16: #{simple_conv_forward.1} parent=11 // pred_fallthru
          _
        // Predicated region
        $region17: #{simple_conv_forward.1} parent=11 // pred_check
          %p256 = pneg %p86
        $region18: #{simple_conv_forward.1} parent=11 // pred_check_branch
          %258 = sbr.rel (%p256) target = $region20
        $region19: #{simple_conv_forward.1} parent=11 // pred_region
          _
        $region20: #{simple_conv_forward.1} parent=11 // pred_fallthru
          _
        // Predicated region
        $region21: #{simple_conv_forward.1} parent=11 // pred_check
          %p259 = pneg %p107
        $region22: #{simple_conv_forward.1} parent=11 // pred_check_branch
          %261 = sbr.rel (%p259) target = $region24
        $region23: #{simple_conv_forward.1} parent=11 // pred_region
          _
        $region24: #{simple_conv_forward.1} parent=11 // pred_fallthru
          _
        // Predicated region
        $region25: #{simple_conv_forward.1} parent=11 // pred_check
          %p262 = pneg %p128
        $region26: #{simple_conv_forward.1} parent=11 // pred_check_branch
          %264 = sbr.rel (%p262) target = $region28
        $region27: #{simple_conv_forward.1} parent=11 // pred_region
          _
        $region28: #{simple_conv_forward.1} parent=11 // pred_fallthru
          _
        // Predicated region
        $region29: #{simple_conv_forward.1} parent=11 // pred_check
          %p265 = pneg %p149
        $region30: #{simple_conv_forward.1} parent=11 // pred_check_branch
          %267 = sbr.rel (%p265) target = $region32
        $region31: #{simple_conv_forward.1} parent=11 // pred_region
          _
        $region32: #{simple_conv_forward.1} parent=11 // pred_fallthru
          _
        // Predicated region
        $region33: #{simple_conv_forward.1} parent=11 // pred_check
          %p268 = pneg %p170
        $region34: #{simple_conv_forward.1} parent=11 // pred_check_branch
          %270 = sbr.rel (%p268) target = $region36
        $region35: #{simple_conv_forward.1} parent=11 // pred_region
          _
        $region36: #{simple_conv_forward.1} parent=11 // pred_fallthru
          _
        // Predicated region
        $region37: #{simple_conv_forward.1} parent=11 // pred_check
          %p271 = pneg %p191
        $region38: #{simple_conv_forward.1} parent=11 // pred_check_branch
          %273 = sbr.rel (%p271) target = $region40
        $region39: #{simple_conv_forward.1} parent=11 // pred_region
          _
        $region40: #{simple_conv_forward.1} parent=11 // pred_fallthru
          _
        // Predicated region
        $region41: #{simple_conv_forward.1} parent=11 // pred_check
          %p274 = pneg %p212
        $region42: #{simple_conv_forward.1} parent=11 // pred_check_branch
          %276 = sbr.rel (%p274) target = $region44
        $region43: #{simple_conv_forward.1} parent=11 // pred_region
          _
        $region44: #{simple_conv_forward.1} parent=11 // pred_fallthru
          _
      $region12: #{simple_conv_forward.1} parent=5 // pred_fallthru
        _
      %p277 = scmp.lt.s32.totalorder %s18, 2
      // Predicated region
      $region45: #{simple_conv_forward.1} parent=5 // pred_check
        %p278 = pneg %p277
      $region46: #{simple_conv_forward.1} parent=5 // pred_check_branch
        %280 = sbr.rel (%p278) target = $region48
      $region47: #{simple_conv_forward.1} parent=5 // pred_region
        // Predicated region
        $region49: #{simple_conv_forward.1} parent=47 // pred_check
          %p281 = pneg %p38
        $region50: #{simple_conv_forward.1} parent=47 // pred_check_branch
          %283 = sbr.rel (%p281) target = $region52
        $region51: #{simple_conv_forward.1} parent=47 // pred_region
          %p284 = scmp.lt.s32.totalorder %s18, 1
          %s285 = scalar_select %p284, %s18, 1
          %s286 = smul.addr %s285, 8
          %s287 = scalar_lea.vmem %s0, %s286
        $region52: #{simple_conv_forward.1} parent=47 // pred_fallthru
          _
      $region48: #{simple_conv_forward.1} parent=5 // pred_fallthru
        _
      %p288 = scmp.le.s32.totalorder 1, %s18
      %p289 = scmp.lt.s32.totalorder %s18, 3
      %p290 = pnand %p288, %p289
      %p291 = pneg %p290
      // Predicated region
      $region53: #{simple_conv_forward.1} parent=5 // pred_check
        _
      $region54: #{simple_conv_forward.1} parent=5 // pred_check_branch
        %293 = sbr.rel (%p290) target = $region56
      $region55: #{simple_conv_forward.1} parent=5 // pred_region
        %s294 = ssub.s32 %s18, 1
        %p295 = scmp.lt.s32.totalorder %s23, 1
        %s296 = scalar_select %p295, %s23, 1
        %s297 = smul.addr %s296, 8
        %s298 = scalar_lea.vmem %s0, %s297
        %p299 = pneg %p44
        %p300 = pneg %p41
        %p301 = pneg %p65
        %p302 = pneg %p62
        %p303 = pneg %p86
        %p304 = pneg %p83
        %p305 = pneg %p107
        %p306 = pneg %p104
        %p307 = pneg %p128
        %p308 = pneg %p125
        %p309 = pneg %p149
        %p310 = pneg %p146
        %p311 = pneg %p170
        %p312 = pneg %p167
        %p313 = pneg %p191
        %p314 = pneg %p188
        %p315 = pneg %p212
        %p316 = pneg %p209
        %p317 = pneg %p238
        %p318 = pneg %p235
        %s319 = sand.u32 %s225, 1
        %s320 = scalar_lea.sflag [#allocation3], %s319
        %s321 = sand.u32 %s225, 1
        %s322 = smul.addr %s321, 8
        %s323 = scalar_lea.vmem [#allocation2], %s322
        %p324 = scmp.lt.s32.totalorder %s23, 1
        %s325 = scalar_select %p324, %s23, 1
        %s326 = smul.addr %s325, 8
        %s327 = scalar_lea.vmem %s0, %s326
        %v328 = vlaneseq
        %v329 = vand.u32 %v328, 127
        %vm330 = vcmp.lt.s32.totalorder %v329, 0
        %v331 = vsub.s32 0, %v329
        %v332 = vsel %vm330, %v331, %v329
        %v333 = vshrl.u32 %v332, 7
        %v334 = vand.u32 %v332, 127
        %v335 = vsub.s32 0, %v334
        %v336 = vsel %vm330, %v335, %v334
        %vm337 = vcmp.ne.s32.totalorder %v336, 0
        %vm338 = vcmp.lt.s32.totalorder %v336, 0
        %vm339 = vmand %vm338, %vm337
        %v340 = vadd.s32 %v336, 128
        %v341 = vsel %vm339, %v340, %v336
        %vm342 = vcmp.lt.s32.totalorder %v341, 16
        %v343 = vld [vmem:[%s327] sm:$0xff]
        %v344 = vsel %vm342, 1, 0
        %vm345 = vcmp.eq.s32.totalorder %v344, 1
        %v346 = vsel %vm345, %v343, 0.0
        %348 = vrot.lane.b32.xlu0 %v346, 2
        %v349 = vpop.permute.xlu0 %348
        %351 = vrot.lane.b32.xlu0 %v346, 1
        %v352 = vpop.permute.xlu0 %351
        %354 = vrot.lane.b32.xlu0 %v346, 127
        %v355 = vpop.permute.xlu0 %354
        %357 = vrot.lane.b32.xlu0 %v346, 126
        %v358 = vpop.permute.xlu0 %357
        %v360 = vld [vmem:[%s1] sm:$0xff]
        %v361 = vld [vmem:[%s1 + $0x8] sm:$0xff]
        %v362 = vld [vmem:[%s2] sm:$0xff]
        %v363 = vld [vmem:[%s2 + $0x8] sm:$0xff]
        %365 = vset.pattern.permute.xlu0 0
        %366 = vperm.xlu0 %365, %v362
        %v367 = vpop.permute.xlu0 %366
        %370 = vset.pattern.permute.xlu0 0
        %371 = vperm.xlu0 %370, %v363
        %v372 = vpop.permute.xlu0 %371
        %vm374 = vcmask 326656
        %v376 = vsel %vm374, %v360, 0
        %v379 = vsel %vm374, %v361, 0
        %381 = vmatprep.subr.mxu0 0.0
        %382 = vmatpush1.msra.mxu0 %v349
        %383 = vmatprep.subr.mxu0 0.0
        %384 = vmatpush1.msra.mxu0 %v352
        %385 = vmatprep.subr.mxu0 0.0
        %386 = vmatpush1.msra.mxu0 %v346
        %387 = vmatprep.subr.mxu0 0.0
        %388 = vmatpush1.msra.mxu0 %v355
        %389 = vmatprep.subr.mxu0 0.0
        %390 = vmatpush1.msra.mxu0 %v358
        %391 = vmatprep.subr.mxu0 0.0
        %392 = vmatpush1.msra.mxu0 0.0
        %393 = vmatprep.subr.mxu0 0.0
        %394 = vmatpush1.msra.mxu0 0.0
        %395 = vmatprep.subr.mxu0 0.0
        %396 = vmatpush1.msra.mxu0 0.0
        %397 = vmatprep.subr.mxu0 0.0
        %398 = vmatpush1.msra.mxu0 0.0
        %399 = vmatprep.subr.mxu0 0.0
        %400 = vmatpush1.msra.mxu0 0.0
        %401 = vmatprep.subr.mxu0 0.0
        %402 = vmatpush1.msra.mxu0 0.0
        %403 = vmatprep.subr.mxu0 0.0
        %404 = vmatpush1.msra.mxu0 0.0
        %405 = vmatprep.subr.mxu0 0.0
        %406 = vmatpush1.msra.mxu0 0.0
        %407 = vmatprep.subr.mxu0 0.0
        %408 = vmatpush1.msra.mxu0 0.0
        %409 = vmatprep.subr.mxu0 0.0
        %410 = vmatpush1.msra.mxu0 0.0
        %411 = vmatprep.subr.mxu0 0.0
        %412 = vmatpush1.msra.mxu0 0.0
        %413 = vmatprep.subr.mxu0 0.0
        %414 = vmatpush1.msra.mxu0 0.0
        %415 = vmatprep.subr.mxu0 0.0
        %416 = vmatpush1.msra.mxu0 0.0
        %417 = vmatprep.subr.mxu0 0.0
        %418 = vmatpush1.msra.mxu0 0.0
        %419 = vmatprep.subr.mxu0 0.0
        %420 = vmatpush1.msra.mxu0 0.0
        %421 = vmatprep.subr.mxu0 0.0
        %422 = vmatpush1.msra.mxu0 0.0
        %423 = vmatprep.subr.mxu0 0.0
        %424 = vmatpush1.msra.mxu0 0.0
        %425 = vmatprep.subr.mxu0 0.0
        %426 = vmatpush1.msra.mxu0 0.0
        %427 = vmatprep.subr.mxu0 0.0
        %428 = vmatpush1.msra.mxu0 0.0
        %429 = vmatprep.subr.mxu0 0.0
        %430 = vmatpush1.msra.mxu0 0.0
        %431 = vmatprep.subr.mxu0 0.0
        %432 = vmatpush1.msra.mxu0 0.0
        %433 = vmatprep.subr.mxu0 0.0
        %434 = vmatpush1.msra.mxu0 0.0
        %435 = vmatprep.subr.mxu0 0.0
        %436 = vmatpush1.msra.mxu0 0.0
        %437 = vmatprep.subr.mxu0 0.0
        %438 = vmatpush1.msra.mxu0 0.0
        %439 = vmatprep.subr.mxu0 0.0
        %440 = vmatpush1.msra.mxu0 0.0
        %441 = vmatprep.subr.mxu0 0.0
        %442 = vmatpush1.msra.mxu0 0.0
        %443 = vmatprep.subr.mxu0 0.0
        %444 = vmatpush1.msra.mxu0 0.0
        %445 = vmatprep.mubr.f32.mxu0 0.0
        %446 = vmatmul.mubr.f32.gmra.mrb[0].mxu0 %v376
        %v447 = vpop.f32.mrb[0].mxu0
        %v448 = vadd.f32 %v367, %v447
        %v449 = vpop.f32.mrb[0].mxu0
        %450 = vmatprep.mubr.f32.mxu0 0.0
        %451 = vmatmul.mubr.f32.gmra.mrb[0].mxu0 %v379
        %v452 = vpop.f32.mrb[0].mxu0
        %v453 = vadd.f32 %v372, %v452
        %v454 = vpop.f32.mrb[0].mxu0
        %455 = vdwg.mxu0
        %v456 = vmax.f32 %v448, 0.0
        %v457 = vmax.f32 %v453, 0.0
        %v458 = vsel %vm345, %v456, 0.0
        %v459 = vsel %vm345, %v457, 0.0
        %462 = vrot.lane.b32.xlu0 %v458, 2
        %v463 = vpop.permute.xlu0 %462
        %464 = vrot.lane.b32.xlu0 %v459, 2
        %v465 = vpop.permute.xlu0 %464
        %468 = vrot.lane.b32.xlu0 %v458, 1
        %v469 = vpop.permute.xlu0 %468
        %470 = vrot.lane.b32.xlu0 %v459, 1
        %v471 = vpop.permute.xlu0 %470
        %474 = vrot.lane.b32.xlu0 %v458, 127
        %v475 = vpop.permute.xlu0 %474
        %476 = vrot.lane.b32.xlu0 %v459, 127
        %v477 = vpop.permute.xlu0 %476
        %480 = vrot.lane.b32.xlu0 %v458, 126
        %v481 = vpop.permute.xlu0 %480
        %482 = vrot.lane.b32.xlu0 %v459, 126
        %v483 = vpop.permute.xlu0 %482
        %v486 = vld [vmem:[%s3] sm:$0xff]
        %v487 = vld [vmem:[%s3 + $0x8] sm:$0xff]
        %v488 = vld [vmem:[%s3 + $0x10] sm:$0xff]
        %v489 = vld [vmem:[%s3 + $0x18] sm:$0xff]
        %v490 = vld [vmem:[%s4] sm:$0xff]
        %v491 = vld [vmem:[%s4 + $0x8] sm:$0xff]
        %v492 = vld [vmem:[%s4 + $0x10] sm:$0xff]
        %v493 = vld [vmem:[%s4 + $0x18] sm:$0xff]
        %495 = vset.pattern.permute.xlu0 0
        %496 = vperm.xlu0 %495, %v490
        %v497 = vpop.permute.xlu0 %496
        %500 = vset.pattern.permute.xlu0 0
        %501 = vperm.xlu0 %500, %v491
        %v502 = vpop.permute.xlu0 %501
        %505 = vset.pattern.permute.xlu0 0
        %506 = vperm.xlu0 %505, %v492
        %v507 = vpop.permute.xlu0 %506
        %510 = vset.pattern.permute.xlu0 0
        %511 = vperm.xlu0 %510, %v493
        %v512 = vpop.permute.xlu0 %511
        %vm514 = vcmask 654336
        %v516 = vsel %vm514, %v486, 0
        %v519 = vsel %vm514, %v487, 0
        %v522 = vsel %vm514, %v488, 0
        %v525 = vsel %vm514, %v489, 0
        %527 = vmatprep.subr.mxu0 0.0
        %528 = vmatpush1.msra.mxu0 %v463
        %529 = vmatprep.subr.mxu0 0.0
        %530 = vmatpush1.msra.mxu0 %v465
        %531 = vmatprep.subr.mxu0 0.0
        %532 = vmatpush1.msra.mxu0 %v469
        %533 = vmatprep.subr.mxu0 0.0
        %534 = vmatpush1.msra.mxu0 %v471
        %535 = vmatprep.subr.mxu0 0.0
        %536 = vmatpush1.msra.mxu0 %v458
        %537 = vmatprep.subr.mxu0 0.0
        %538 = vmatpush1.msra.mxu0 %v459
        %539 = vmatprep.subr.mxu0 0.0
        %540 = vmatpush1.msra.mxu0 %v475
        %541 = vmatprep.subr.mxu0 0.0
        %542 = vmatpush1.msra.mxu0 %v477
        %543 = vmatprep.subr.mxu0 0.0
        %544 = vmatpush1.msra.mxu0 %v481
        %545 = vmatprep.subr.mxu0 0.0
        %546 = vmatpush1.msra.mxu0 %v483
        %547 = vmatprep.subr.mxu0 0.0
        %548 = vmatpush1.msra.mxu0 0.0
        %549 = vmatprep.subr.mxu0 0.0
        %550 = vmatpush1.msra.mxu0 0.0
        %551 = vmatprep.subr.mxu0 0.0
        %552 = vmatpush1.msra.mxu0 0.0
        %553 = vmatprep.subr.mxu0 0.0
        %554 = vmatpush1.msra.mxu0 0.0
        %555 = vmatprep.subr.mxu0 0.0
        %556 = vmatpush1.msra.mxu0 0.0
        %557 = vmatprep.subr.mxu0 0.0
        %558 = vmatpush1.msra.mxu0 0.0
        %559 = vmatprep.subr.mxu0 0.0
        %560 = vmatpush1.msra.mxu0 0.0
        %561 = vmatprep.subr.mxu0 0.0
        %562 = vmatpush1.msra.mxu0 0.0
        %563 = vmatprep.subr.mxu0 0.0
        %564 = vmatpush1.msra.mxu0 0.0
        %565 = vmatprep.subr.mxu0 0.0
        %566 = vmatpush1.msra.mxu0 0.0
        %567 = vmatprep.subr.mxu0 0.0
        %568 = vmatpush1.msra.mxu0 0.0
        %569 = vmatprep.subr.mxu0 0.0
        %570 = vmatpush1.msra.mxu0 0.0
        %571 = vmatprep.subr.mxu0 0.0
        %572 = vmatpush1.msra.mxu0 0.0
        %573 = vmatprep.subr.mxu0 0.0
        %574 = vmatpush1.msra.mxu0 0.0
        %575 = vmatprep.subr.mxu0 0.0
        %576 = vmatpush1.msra.mxu0 0.0
        %577 = vmatprep.subr.mxu0 0.0
        %578 = vmatpush1.msra.mxu0 0.0
        %579 = vmatprep.subr.mxu0 0.0
        %580 = vmatpush1.msra.mxu0 0.0
        %581 = vmatprep.subr.mxu0 0.0
        %582 = vmatpush1.msra.mxu0 0.0
        %583 = vmatprep.subr.mxu0 0.0
        %584 = vmatpush1.msra.mxu0 0.0
        %585 = vmatprep.subr.mxu0 0.0
        %586 = vmatpush1.msra.mxu0 0.0
        %587 = vmatprep.subr.mxu0 0.0
        %588 = vmatpush1.msra.mxu0 0.0
        %589 = vmatprep.subr.mxu0 0.0
        %590 = vmatpush1.msra.mxu0 0.0
        %591 = vmatprep.mubr.f32.mxu0 0.0
        %592 = vmatmul.mubr.f32.gmra.mrb[0].mxu0 %v516
        %v593 = vpop.f32.mrb[0].mxu0
        %v594 = vadd.f32 %v497, %v593
        %v595 = vpop.f32.mrb[0].mxu0
        %596 = vmatprep.mubr.f32.mxu0 0.0
        %597 = vmatmul.mubr.f32.gmra.mrb[0].mxu0 %v519
        %v598 = vpop.f32.mrb[0].mxu0
        %v599 = vadd.f32 %v502, %v598
        %v600 = vpop.f32.mrb[0].mxu0
        %601 = vmatprep.mubr.f32.mxu0 0.0
        %602 = vmatmul.mubr.f32.gmra.mrb[0].mxu0 %v522
        %v603 = vpop.f32.mrb[0].mxu0
        %v604 = vadd.f32 %v507, %v603
        %v605 = vpop.f32.mrb[0].mxu0
        %606 = vmatprep.mubr.f32.mxu0 0.0
        %607 = vmatmul.mubr.f32.gmra.mrb[0].mxu0 %v525
        %v608 = vpop.f32.mrb[0].mxu0
        %v609 = vadd.f32 %v512, %v608
        %v610 = vpop.f32.mrb[0].mxu0
        %611 = vdwg.mxu0
        %v612 = vmax.f32 %v594, 0.0
        %v613 = vmax.f32 %v599, 0.0
        %v614 = vmax.f32 %v604, 0.0
        %v615 = vmax.f32 %v609, 0.0
        %v616 = vsel %vm345, %v612, 0.0
        %v617 = vsel %vm345, %v613, 0.0
        %v618 = vsel %vm345, %v614, 0.0
        %v619 = vsel %vm345, %v615, 0.0
        %624 = vrot.lane.b32.xlu0 %v616, 2
        %v625 = vpop.permute.xlu0 %624
        %626 = vrot.lane.b32.xlu0 %v617, 2
        %v627 = vpop.permute.xlu0 %626
        %628 = vrot.lane.b32.xlu0 %v618, 2
        %v629 = vpop.permute.xlu0 %628
        %630 = vrot.lane.b32.xlu0 %v619, 2
        %v631 = vpop.permute.xlu0 %630
        %636 = vrot.lane.b32.xlu0 %v616, 1
        %v637 = vpop.permute.xlu0 %636
        %638 = vrot.lane.b32.xlu0 %v617, 1
        %v639 = vpop.permute.xlu0 %638
        %640 = vrot.lane.b32.xlu0 %v618, 1
        %v641 = vpop.permute.xlu0 %640
        %642 = vrot.lane.b32.xlu0 %v619, 1
        %v643 = vpop.permute.xlu0 %642
        %648 = vrot.lane.b32.xlu0 %v616, 127
        %v649 = vpop.permute.xlu0 %648
        %650 = vrot.lane.b32.xlu0 %v617, 127
        %v651 = vpop.permute.xlu0 %650
        %652 = vrot.lane.b32.xlu0 %v618, 127
        %v653 = vpop.permute.xlu0 %652
        %654 = vrot.lane.b32.xlu0 %v619, 127
        %v655 = vpop.permute.xlu0 %654
        %660 = vrot.lane.b32.xlu0 %v616, 126
        %v661 = vpop.permute.xlu0 %660
        %662 = vrot.lane.b32.xlu0 %v617, 126
        %v663 = vpop.permute.xlu0 %662
        %664 = vrot.lane.b32.xlu0 %v618, 126
        %v665 = vpop.permute.xlu0 %664
        %666 = vrot.lane.b32.xlu0 %v619, 126
        %v667 = vpop.permute.xlu0 %666
        %v672 = vld [vmem:[%s5] sm:$0xff]
        %v673 = vld [vmem:[%s5 + $0x8] sm:$0xff]
        %v674 = vld [vmem:[%s5 + $0x10] sm:$0xff]
        %v675 = vld [vmem:[%s5 + $0x18] sm:$0xff]
        %v676 = vld [vmem:[%s6] sm:$0xff]
        %v677 = vld [vmem:[%s6 + $0x8] sm:$0xff]
        %679 = vset.pattern.permute.xlu0 0
        %680 = vperm.xlu0 %679, %v676
        %v681 = vpop.permute.xlu0 %680
        %684 = vset.pattern.permute.xlu0 0
        %685 = vperm.xlu0 %684, %v677
        %v686 = vpop.permute.xlu0 %685
        %vm688 = vcmask 261120
        %v690 = vsel %vm688, %v673, 0
        %v693 = vsel %vm688, %v675, 0
        %695 = vmatprep.subr.mxu0 0.0
        %696 = vmatpush1.msra.mxu0 %v625
        %697 = vmatprep.subr.mxu0 0.0
        %698 = vmatpush1.msra.mxu0 %v627
        %699 = vmatprep.subr.mxu0 0.0
        %700 = vmatpush1.msra.mxu0 %v629
        %701 = vmatprep.subr.mxu0 0.0
        %702 = vmatpush1.msra.mxu0 %v631
        %703 = vmatprep.subr.mxu0 0.0
        %704 = vmatpush1.msra.mxu0 %v637
        %705 = vmatprep.subr.mxu0 0.0
        %706 = vmatpush1.msra.mxu0 %v639
        %707 = vmatprep.subr.mxu0 0.0
        %708 = vmatpush1.msra.mxu0 %v641
        %709 = vmatprep.subr.mxu0 0.0
        %710 = vmatpush1.msra.mxu0 %v643
        %711 = vmatprep.subr.mxu0 0.0
        %712 = vmatpush1.msra.mxu0 %v616
        %713 = vmatprep.subr.mxu0 0.0
        %714 = vmatpush1.msra.mxu0 %v617
        %715 = vmatprep.subr.mxu0 0.0
        %716 = vmatpush1.msra.mxu0 %v618
        %717 = vmatprep.subr.mxu0 0.0
        %718 = vmatpush1.msra.mxu0 %v619
        %719 = vmatprep.subr.mxu0 0.0
        %720 = vmatpush1.msra.mxu0 %v649
        %721 = vmatprep.subr.mxu0 0.0
        %722 = vmatpush1.msra.mxu0 %v651
        %723 = vmatprep.subr.mxu0 0.0
        %724 = vmatpush1.msra.mxu0 %v653
        %725 = vmatprep.subr.mxu0 0.0
        %726 = vmatpush1.msra.mxu0 %v655
        %727 = vmatprep.subr.mxu0 0.0
        %728 = vmatpush1.msra.mxu0 %v661
        %729 = vmatprep.subr.mxu0 0.0
        %730 = vmatpush1.msra.mxu0 %v663
        %731 = vmatprep.subr.mxu0 0.0
        %732 = vmatpush1.msra.mxu0 %v665
        %733 = vmatprep.subr.mxu0 0.0
        %734 = vmatpush1.msra.mxu0 %v667
        %735 = vmatprep.subr.mxu0 0.0
        %736 = vmatpush1.msra.mxu0 0.0
        %737 = vmatprep.subr.mxu0 0.0
        %738 = vmatpush1.msra.mxu0 0.0
        %739 = vmatprep.subr.mxu0 0.0
        %740 = vmatpush1.msra.mxu0 0.0
        %741 = vmatprep.subr.mxu0 0.0
        %742 = vmatpush1.msra.mxu0 0.0
        %743 = vmatprep.subr.mxu0 0.0
        %744 = vmatpush1.msra.mxu0 0.0
        %745 = vmatprep.subr.mxu0 0.0
        %746 = vmatpush1.msra.mxu0 0.0
        %747 = vmatprep.subr.mxu0 0.0
        %748 = vmatpush1.msra.mxu0 0.0
        %749 = vmatprep.subr.mxu0 0.0
        %750 = vmatpush1.msra.mxu0 0.0
        %751 = vmatprep.subr.mxu0 0.0
        %752 = vmatpush1.msra.mxu0 0.0
        %753 = vmatprep.subr.mxu0 0.0
        %754 = vmatpush1.msra.mxu0 0.0
        %755 = vmatprep.subr.mxu0 0.0
        %756 = vmatpush1.msra.mxu0 0.0
        %757 = vmatprep.subr.mxu0 0.0
        %758 = vmatpush1.msra.mxu0 0.0
        %759 = vmatprep.mubr.f32.mxu0 %v690
        %760 = vmatmul.mubr.f32.gmra.mrb[0].mxu0 %v672
        %v761 = vpop.f32.mrb[0].mxu0
        %v762 = vadd.f32 %v681, %v761
        %v763 = vpop.f32.mrb[0].mxu0
        %764 = vmatprep.mubr.f32.mxu0 %v693
        %765 = vmatmul.mubr.f32.gmra.mrb[0].mxu0 %v674
        %v766 = vpop.f32.mrb[0].mxu0
        %v767 = vadd.f32 %v686, %v766
        %v768 = vpop.f32.mrb[0].mxu0
        %769 = vdwg.mxu0
        %v770 = vmax.f32 %v762, 0.0
        %v771 = vmax.f32 %v767, 0.0
        %v772 = vsel %vm345, %v770, 0.0
        %v773 = vsel %vm345, %v771, 0.0
        %776 = vrot.lane.b32.xlu0 %v772, 2
        %v777 = vpop.permute.xlu0 %776
        %778 = vrot.lane.b32.xlu0 %v773, 2
        %v779 = vpop.permute.xlu0 %778
        %782 = vrot.lane.b32.xlu0 %v772, 1
        %v783 = vpop.permute.xlu0 %782
        %784 = vrot.lane.b32.xlu0 %v773, 1
        %v785 = vpop.permute.xlu0 %784
        %788 = vrot.lane.b32.xlu0 %v772, 127
        %v789 = vpop.permute.xlu0 %788
        %790 = vrot.lane.b32.xlu0 %v773, 127
        %v791 = vpop.permute.xlu0 %790
        %794 = vrot.lane.b32.xlu0 %v772, 126
        %v795 = vpop.permute.xlu0 %794
        %796 = vrot.lane.b32.xlu0 %v773, 126
        %v797 = vpop.permute.xlu0 %796
        %v800 = vld [vmem:[%s7] sm:$0xff]
        %v801 = vld [vmem:[%s8] sm:$0xff]
        %803 = vset.pattern.permute.xlu0 0
        %804 = vperm.xlu0 %803, %v801
        %v805 = vpop.permute.xlu0 %804
        %v808 = vsel %vm514, %v800, 0
        %810 = vmatprep.subr.mxu0 0.0
        %811 = vmatpush1.msra.mxu0 %v777
        %812 = vmatprep.subr.mxu0 0.0
        %813 = vmatpush1.msra.mxu0 %v779
        %814 = vmatprep.subr.mxu0 0.0
        %815 = vmatpush1.msra.mxu0 %v783
        %816 = vmatprep.subr.mxu0 0.0
        %817 = vmatpush1.msra.mxu0 %v785
        %818 = vmatprep.subr.mxu0 0.0
        %819 = vmatpush1.msra.mxu0 %v772
        %820 = vmatprep.subr.mxu0 0.0
        %821 = vmatpush1.msra.mxu0 %v773
        %822 = vmatprep.subr.mxu0 0.0
        %823 = vmatpush1.msra.mxu0 %v789
        %824 = vmatprep.subr.mxu0 0.0
        %825 = vmatpush1.msra.mxu0 %v791
        %826 = vmatprep.subr.mxu0 0.0
        %827 = vmatpush1.msra.mxu0 %v795
        %828 = vmatprep.subr.mxu0 0.0
        %829 = vmatpush1.msra.mxu0 %v797
        %830 = vmatprep.subr.mxu0 0.0
        %831 = vmatpush1.msra.mxu0 0.0
        %832 = vmatprep.subr.mxu0 0.0
        %833 = vmatpush1.msra.mxu0 0.0
        %834 = vmatprep.subr.mxu0 0.0
        %835 = vmatpush1.msra.mxu0 0.0
        %836 = vmatprep.subr.mxu0 0.0
        %837 = vmatpush1.msra.mxu0 0.0
        %838 = vmatprep.subr.mxu0 0.0
        %839 = vmatpush1.msra.mxu0 0.0
        %840 = vmatprep.subr.mxu0 0.0
        %841 = vmatpush1.msra.mxu0 0.0
        %842 = vmatprep.subr.mxu0 0.0
        %843 = vmatpush1.msra.mxu0 0.0
        %844 = vmatprep.subr.mxu0 0.0
        %845 = vmatpush1.msra.mxu0 0.0
        %846 = vmatprep.subr.mxu0 0.0
        %847 = vmatpush1.msra.mxu0 0.0
        %848 = vmatprep.subr.mxu0 0.0
        %849 = vmatpush1.msra.mxu0 0.0
        %850 = vmatprep.subr.mxu0 0.0
        %851 = vmatpush1.msra.mxu0 0.0
        %852 = vmatprep.subr.mxu0 0.0
        %853 = vmatpush1.msra.mxu0 0.0
        %854 = vmatprep.subr.mxu0 0.0
        %855 = vmatpush1.msra.mxu0 0.0
        %856 = vmatprep.subr.mxu0 0.0
        %857 = vmatpush1.msra.mxu0 0.0
        %858 = vmatprep.subr.mxu0 0.0
        %859 = vmatpush1.msra.mxu0 0.0
        %860 = vmatprep.subr.mxu0 0.0
        %861 = vmatpush1.msra.mxu0 0.0
        %862 = vmatprep.subr.mxu0 0.0
        %863 = vmatpush1.msra.mxu0 0.0
        %864 = vmatprep.subr.mxu0 0.0
        %865 = vmatpush1.msra.mxu0 0.0
        %866 = vmatprep.subr.mxu0 0.0
        %867 = vmatpush1.msra.mxu0 0.0
        %868 = vmatprep.subr.mxu0 0.0
        %869 = vmatpush1.msra.mxu0 0.0
        %870 = vmatprep.subr.mxu0 0.0
        %871 = vmatpush1.msra.mxu0 0.0
        %872 = vmatprep.subr.mxu0 0.0
        %873 = vmatpush1.msra.mxu0 0.0
        %874 = vmatprep.mubr.f32.mxu0 0.0
        %875 = vmatmul.mubr.f32.gmra.mrb[0].mxu0 %v808
        %v876 = vpop.f32.mrb[0].mxu0
        %v877 = vadd.f32 %v805, %v876
        %v878 = vpop.f32.mrb[0].mxu0
        %879 = vdwg.mxu0
        %v880 = vmax.f32 %v877, 0.0
        %v881 = vsel %vm345, %v880, 0.0
        %882 = vst [vmem:[%s323] sm:$0xff] %v881
        %s883 = sand.u32 %s225, 1
        %s884 = scalar_lea.sflag [#allocation3], %s883
        %s885 = sand.u32 %s225, 1
        %s886 = smul.addr %s885, 8
        %s887 = scalar_lea.vmem [#allocation2], %s886
        // Predicated region
        $region57: #{simple_conv_forward.1} parent=55 // pred_check
          %p888 = pneg %p235
        $region58: #{simple_conv_forward.1} parent=55 // pred_check_branch
          %890 = sbr.rel (%p888) target = $region60
        $region59: #{simple_conv_forward.1} parent=55 // pred_region
          %s892 = ssub.s32 128, 128
          %893 = vsyncadd %s884, %s892
          %s894 = smul.addr %s23, 128
          %s895 = scalar_lea.hbm %s9, %s894
          %s897 = sshll.u32 %s887, 4
          %s898 = int_to_ptr.vmem [resolvable:$true] %s897
          %900 = dma.vmem_to_hbm [thread:$0]  %s898, 128, %s895, %s884
        $region60: #{simple_conv_forward.1} parent=55 // pred_fallthru
          _
      $region56: #{simple_conv_forward.1} parent=5 // pred_fallthru
        _
      %p901 = scmp.le.s32.totalorder 2, %s18
      // Predicated region
      $region61: #{simple_conv_forward.1} parent=5 // pred_check
        %p902 = pneg %p901
      $region62: #{simple_conv_forward.1} parent=5 // pred_check_branch
        %904 = sbr.rel (%p902) target = $region64
      $region63: #{simple_conv_forward.1} parent=5 // pred_region
        %s905 = ssub.s32 %s18, 2
        // Predicated region
        $region65: #{simple_conv_forward.1} parent=63 // pred_check
          %p906 = pneg %p241
        $region66: #{simple_conv_forward.1} parent=63 // pred_check_branch
          %908 = sbr.rel (%p906) target = $region68
        $region67: #{simple_conv_forward.1} parent=63 // pred_region
          %s909 = sand.u32 %s226, 1
          %s910 = scalar_lea.sflag [#allocation3], %s909
          %s911 = sand.u32 %s226, 1
          %s912 = smul.addr %s911, 8
          %s913 = scalar_lea.vmem [#allocation2], %s912
          %914 = dma.done %s910, 128
        $region68: #{simple_conv_forward.1} parent=63 // pred_fallthru
          _
      $region64: #{simple_conv_forward.1} parent=5 // pred_fallthru
        _
    $region6: #{simple_conv_forward.1} parent=1 // loop_footer
      %s22 = sadd.s32 1, %s18
    $region7: #{simple_conv_forward.1} parent=1 // loop_footer_branch
      %17 = sbr.rel target = $region3
    $region8: #{simple_conv_forward.1} parent=1 // loop_exit
      _
    %915 = vsyncpa [#allocation3], 1
    %s916 = scalar_lea.sflag [#allocation3], 1
    %917 = vsyncpa %s916, 1

</llo_original>
